<compile_context>
chip_gen: v6e
topology: v6e:2x2x1
jax: 0.10.0
libtpu: 0.0.40
codegen_flags: <defaults>
</compile_context>

<pallas_src>
import functools

import jax
import jax.numpy as jnp
from jax.experimental import pallas as pl
from jax.experimental.pallas import tpu as pltpu

HIDDEN = 32


def branch_kernel(xt_ref, ut_ref, w1a_ref, b1a_ref, w1b_ref,
                  wca_ref, bca_ref, wcb_ref, scal_ref, o_ref):
    # xt_ref/ut_ref: [2, TB]  (row 0 -> column 0 of x/u, row 1 -> column 1)
    # w1a/wca: [H, 2], b1a/bca: [H, 1], w1b/wcb: [H, 1]
    # scal_ref (SMEM): [b1b, bcb]  (scalar biases of the two Linear(H, 1) layers)
    x0 = xt_ref[0:1, :]            # [1, TB] first prediction
    x1 = xt_ref[1:2, :]            # [1, TB] second prediction
    u0 = ut_ref[0:1, :]            # [1, TB] first uncertainty
    u1 = ut_ref[1:2, :]            # [1, TB] second uncertainty

    w_p = w1a_ref[:, 0:1]          # [H, 1] weight column for the prediction input
    w_u = w1a_ref[:, 1:2]          # [H, 1] weight column for the uncertainty input
    b1 = b1a_ref[...]              # [H, 1]
    w1b = w1b_ref[...]             # [H, 1]
    b1b = scal_ref[0]

    # model_1 applied to both stacked inputs (shared weights); hidden on sublanes.
    h_first = jnp.maximum(w_p * x0 + w_u * u0 + b1, 0.0)          # [H, TB]
    h_second = jnp.maximum(w_p * x1 + w_u * u1 + b1, 0.0)         # [H, TB]
    o_first = jnp.maximum(
        jnp.sum(h_first * w1b, axis=0, keepdims=True) + b1b, 0.0)     # [1, TB]
    o_second = jnp.maximum(
        jnp.sum(h_second * w1b, axis=0, keepdims=True) + b1b, 0.0)    # [1, TB]

    # combined_branch on cat([o_first, o_second], dim=1)  (no final ReLU).
    wc_p = wca_ref[:, 0:1]
    wc_u = wca_ref[:, 1:2]
    hc = jnp.maximum(wc_p * o_first + wc_u * o_second + bca_ref[...], 0.0)  # [H, TB]
    out = jnp.sum(hc * wcb_ref[...], axis=0, keepdims=True) + scal_ref[1]   # [1, TB]
    o_ref[...] = out.astype(o_ref.dtype)


def _branch_forward(x, u, params, *, block_b):
    """x, u: [B, >=2] float32 -> [B, 1] float32 (forward of BranchForEveryInput)."""
    w1a, b1a, w1b, b1b, wca, bca, wcb, bcb = params
    H = w1a.shape[0]
    B = x.shape[0]

    def round_up(n, m):
        return ((n + m - 1) // m) * m

    TB = min(block_b, round_up(B, 128))   # lane-axis batch tile (multiple of 128)
    Bp = round_up(B, TB)                  # padded batch, divisible by TB

    # Put batch on the lane axis (lane-dense loads/stores); pad batch to the tile.
    xt = jnp.pad(x[:, :2].astype(jnp.float32).T, ((0, 0), (0, Bp - B)))   # [2, Bp]
    ut = jnp.pad(u[:, :2].astype(jnp.float32).T, ((0, 0), (0, Bp - B)))   # [2, Bp]
    scal = jnp.stack([b1b, bcb]).astype(jnp.float32)                      # [2] -> SMEM

    const = lambda shape: pl.BlockSpec(shape, lambda i: (0, 0))           # resident
    out = pl.pallas_call(
        branch_kernel,
        out_shape=jax.ShapeDtypeStruct((1, Bp), jnp.float32),
        grid=(Bp // TB,),
        in_specs=[
            pl.BlockSpec((2, TB), lambda i: (0, i)),            # xt  (batch-tiled)
            pl.BlockSpec((2, TB), lambda i: (0, i)),            # ut  (batch-tiled)
            const((H, 2)),                                      # w1a
            const((H, 1)),                                      # b1a
            const((H, 1)),                                      # w1b
            const((H, 2)),                                      # wca
            const((H, 1)),                                      # bca
            const((H, 1)),                                      # wcb
            pl.BlockSpec(memory_space=pltpu.MemorySpace.SMEM),  # scalar biases
        ],
        out_specs=pl.BlockSpec((1, TB), lambda i: (0, i)),      # lane-dense output
        compiler_params=pltpu.CompilerParams(
            dimension_semantics=("parallel",)),
    )(xt, ut, w1a, b1a, w1b, wca, bca, wcb, scal)
    return out[0, :B].reshape(B, 1)


branch_forward = jax.jit(_branch_forward, static_argnames=("block_b",))


def ref_forward(x, u, params):
    """Pure-JAX reference matching the PyTorch forward."""
    w1a, b1a, w1b, b1b, wca, bca, wcb, bcb = params
    first = jnp.stack([x[:, 0], u[:, 0]], axis=1)        # [B, 2]
    second = jnp.stack([x[:, 1], u[:, 1]], axis=1)       # [B, 2]

    def model1(inp):
        h = jax.nn.relu(inp @ w1a.T + b1a[:, 0])         # [B, H]
        return jax.nn.relu(h @ w1b + b1b)                # [B, 1]

    o_first = model1(first)
    o_second = model1(second)
    comb = jnp.concatenate([o_first, o_second], axis=1)  # [B, 2]
    hc = jax.nn.relu(comb @ wca.T + bca[:, 0])           # [B, H]
    return hc @ wcb + bcb                                # [B, 1]


def init_params(key, hidden=HIDDEN):
    """Deterministic init mimicking nn.Linear's uniform(-1/sqrt(fan_in), +).

    Layer-1 weights are kept in torch's [out=H, in=2] layout; layer-2 weights
    are stored transposed as [H, 1]; layer-2 biases are scalars.
    """
    def linear(k, fan_in, fan_out):
        kw, kb = jax.random.split(k)
        bound = 1.0 / jnp.sqrt(jnp.float32(fan_in))
        w = jax.random.uniform(kw, (fan_out, fan_in), jnp.float32, -bound, bound)
        b = jax.random.uniform(kb, (fan_out,), jnp.float32, -bound, bound)
        return w, b

    k1, k2, k3, k4 = jax.random.split(key, 4)
    w1a, b1a = linear(k1, 2, hidden)        # model_1: Linear(2, H)
    w1b_t, b1b = linear(k2, hidden, 1)      # model_1: Linear(H, 1)
    wca, bca = linear(k3, 2, hidden)        # combined_branch: Linear(2, H)
    wcb_t, bcb = linear(k4, hidden, 1)      # combined_branch: Linear(H, 1)
    return (w1a, b1a.reshape(hidden, 1), w1b_t.T, b1b[0],
            wca, bca.reshape(hidden, 1), wcb_t.T, bcb[0])


if __name__ == "__main__":
    batch = 8

    key = jax.random.PRNGKey(0)
    kx, ku, kp = jax.random.split(key, 3)
    x = jax.random.normal(kx, (batch, 2), jnp.float32)
    u = jax.random.normal(ku, (batch, 2), jnp.float32)
    params = init_params(kp)

    out = branch_forward(x, u, params, block_b=1024)
    out = jax.block_until_ready(out)

    ref = ref_forward(x, u, params)
    assert out.shape == (batch, 1), out.shape
    assert jnp.allclose(out, ref, atol=1e-5, rtol=1e-5)

    print("KERNEL_OK")
</pallas_src>

<mosaic_0001>
module attributes {stable_mosaic.version = 11 : i64} {
  func.func @branch_kernel(%arg0: i32, %arg1: memref<2x128xf32, #tpu.memory_space<vmem>>, %arg2: memref<2x128xf32, #tpu.memory_space<vmem>>, %arg3: memref<32x2xf32, #tpu.memory_space<vmem>>, %arg4: memref<32x1xf32, #tpu.memory_space<vmem>>, %arg5: memref<32x1xf32, #tpu.memory_space<vmem>>, %arg6: memref<32x2xf32, #tpu.memory_space<vmem>>, %arg7: memref<32x1xf32, #tpu.memory_space<vmem>>, %arg8: memref<32x1xf32, #tpu.memory_space<vmem>>, %arg9: memref<2xf32, #tpu.memory_space<smem>>, %arg10: memref<1x128xf32, #tpu.memory_space<vmem>>) attributes {dimension_semantics = [#tpu.dimension_semantics<parallel>], iteration_bounds = array<i64: 1>, scalar_prefetch = 0 : i64, scratch_operands = 0 : i64, tpu.core_type = #tpu.core_type<tc>, window_params = [{transform_indices = @transform_0, window_bounds = array<i64: 2, 128>}, {transform_indices = @transform_1, window_bounds = array<i64: 2, 128>}, {pipeline_mode = #tpu.pipeline_mode<synchronous>, transform_indices = @transform_2, window_bounds = array<i64: 32, 2>}, {pipeline_mode = #tpu.pipeline_mode<synchronous>, transform_indices = @transform_3, window_bounds = array<i64: 32, 1>}, {pipeline_mode = #tpu.pipeline_mode<synchronous>, transform_indices = @transform_4, window_bounds = array<i64: 32, 1>}, {pipeline_mode = #tpu.pipeline_mode<synchronous>, transform_indices = @transform_5, window_bounds = array<i64: 32, 2>}, {pipeline_mode = #tpu.pipeline_mode<synchronous>, transform_indices = @transform_6, window_bounds = array<i64: 32, 1>}, {pipeline_mode = #tpu.pipeline_mode<synchronous>, transform_indices = @transform_7, window_bounds = array<i64: 32, 1>}, {transform_indices = @transform_8, window_bounds = array<i64: 2>}, {transform_indices = @transform_9, window_bounds = array<i64: 1, 128>}]} {
    %c0 = arith.constant 0 : index
    %c0_0 = arith.constant 0 : index
    %0 = vector.load %arg1[%c0, %c0_0] : memref<2x128xf32, #tpu.memory_space<vmem>>, vector<1x128xf32>
    %c1 = arith.constant 1 : index
    %c0_1 = arith.constant 0 : index
    %1 = vector.load %arg1[%c1, %c0_1] : memref<2x128xf32, #tpu.memory_space<vmem>>, vector<1x128xf32>
    %c0_2 = arith.constant 0 : index
    %c0_3 = arith.constant 0 : index
    %2 = vector.load %arg2[%c0_2, %c0_3] : memref<2x128xf32, #tpu.memory_space<vmem>>, vector<1x128xf32>
    %c1_4 = arith.constant 1 : index
    %c0_5 = arith.constant 0 : index
    %3 = vector.load %arg2[%c1_4, %c0_5] : memref<2x128xf32, #tpu.memory_space<vmem>>, vector<1x128xf32>
    %c0_6 = arith.constant 0 : index
    %c0_7 = arith.constant 0 : index
    %4 = vector.load %arg3[%c0_6, %c0_7] : memref<32x2xf32, #tpu.memory_space<vmem>>, vector<32x1xf32>
    %c0_8 = arith.constant 0 : index
    %c1_9 = arith.constant 1 : index
    %5 = vector.load %arg3[%c0_8, %c1_9] : memref<32x2xf32, #tpu.memory_space<vmem>>, vector<32x1xf32>
    %c0_10 = arith.constant 0 : index
    %c0_11 = arith.constant 0 : index
    %6 = vector.load %arg4[%c0_10, %c0_11] : memref<32x1xf32, #tpu.memory_space<vmem>>, vector<32x1xf32>
    %c0_12 = arith.constant 0 : index
    %c0_13 = arith.constant 0 : index
    %7 = vector.load %arg5[%c0_12, %c0_13] : memref<32x1xf32, #tpu.memory_space<vmem>>, vector<32x1xf32>
    %c0_14 = arith.constant 0 : index
    %8 = memref.load %arg9[%c0_14] : memref<2xf32, #tpu.memory_space<smem>>
    %9 = vector.broadcast %4 : vector<32x1xf32> to vector<32x128xf32>
    %10 = vector.broadcast %0 : vector<1x128xf32> to vector<32x128xf32>
    %11 = arith.mulf %9, %10 : vector<32x128xf32>
    %12 = vector.broadcast %5 : vector<32x1xf32> to vector<32x128xf32>
    %13 = vector.broadcast %2 : vector<1x128xf32> to vector<32x128xf32>
    %14 = arith.mulf %12, %13 : vector<32x128xf32>
    %15 = arith.addf %11, %14 : vector<32x128xf32>
    %16 = vector.broadcast %6 : vector<32x1xf32> to vector<32x128xf32>
    %17 = arith.addf %15, %16 : vector<32x128xf32>
    %cst = arith.constant 0.000000e+00 : f32
    %18 = vector.broadcast %cst : f32 to vector<32x128xf32>
    %19 = arith.maximumf %17, %18 : vector<32x128xf32>
    %20 = vector.broadcast %4 : vector<32x1xf32> to vector<32x128xf32>
    %21 = vector.broadcast %1 : vector<1x128xf32> to vector<32x128xf32>
    %22 = arith.mulf %20, %21 : vector<32x128xf32>
    %23 = vector.broadcast %5 : vector<32x1xf32> to vector<32x128xf32>
    %24 = vector.broadcast %3 : vector<1x128xf32> to vector<32x128xf32>
    %25 = arith.mulf %23, %24 : vector<32x128xf32>
    %26 = arith.addf %22, %25 : vector<32x128xf32>
    %27 = vector.broadcast %6 : vector<32x1xf32> to vector<32x128xf32>
    %28 = arith.addf %26, %27 : vector<32x128xf32>
    %cst_15 = arith.constant 0.000000e+00 : f32
    %29 = vector.broadcast %cst_15 : f32 to vector<32x128xf32>
    %30 = arith.maximumf %28, %29 : vector<32x128xf32>
    %31 = vector.broadcast %7 : vector<32x1xf32> to vector<32x128xf32>
    %32 = arith.mulf %19, %31 : vector<32x128xf32>
    %cst_16 = arith.constant dense<0.000000e+00> : vector<128xf32>
    %33 = vector.multi_reduction <add>, %32, %cst_16 [0] : vector<32x128xf32> to vector<128xf32>
    %34 = vector.shape_cast %33 : vector<128xf32> to vector<1x128xf32>
    %35 = vector.broadcast %8 : f32 to vector<1x128xf32>
    %36 = arith.addf %34, %35 : vector<1x128xf32>
    %cst_17 = arith.constant 0.000000e+00 : f32
    %37 = vector.broadcast %cst_17 : f32 to vector<1x128xf32>
    %38 = arith.maximumf %36, %37 : vector<1x128xf32>
    %39 = vector.broadcast %7 : vector<32x1xf32> to vector<32x128xf32>
    %40 = arith.mulf %30, %39 : vector<32x128xf32>
    %cst_18 = arith.constant dense<0.000000e+00> : vector<128xf32>
    %41 = vector.multi_reduction <add>, %40, %cst_18 [0] : vector<32x128xf32> to vector<128xf32>
    %42 = vector.shape_cast %41 : vector<128xf32> to vector<1x128xf32>
    %43 = vector.broadcast %8 : f32 to vector<1x128xf32>
    %44 = arith.addf %42, %43 : vector<1x128xf32>
    %cst_19 = arith.constant 0.000000e+00 : f32
    %45 = vector.broadcast %cst_19 : f32 to vector<1x128xf32>
    %46 = arith.maximumf %44, %45 : vector<1x128xf32>
    %c0_20 = arith.constant 0 : index
    %c0_21 = arith.constant 0 : index
    %47 = vector.load %arg6[%c0_20, %c0_21] : memref<32x2xf32, #tpu.memory_space<vmem>>, vector<32x1xf32>
    %c0_22 = arith.constant 0 : index
    %c1_23 = arith.constant 1 : index
    %48 = vector.load %arg6[%c0_22, %c1_23] : memref<32x2xf32, #tpu.memory_space<vmem>>, vector<32x1xf32>
    %49 = vector.broadcast %47 : vector<32x1xf32> to vector<32x128xf32>
    %50 = vector.broadcast %38 : vector<1x128xf32> to vector<32x128xf32>
    %51 = arith.mulf %49, %50 : vector<32x128xf32>
    %52 = vector.broadcast %48 : vector<32x1xf32> to vector<32x128xf32>
    %53 = vector.broadcast %46 : vector<1x128xf32> to vector<32x128xf32>
    %54 = arith.mulf %52, %53 : vector<32x128xf32>
    %55 = arith.addf %51, %54 : vector<32x128xf32>
    %c0_24 = arith.constant 0 : index
    %c0_25 = arith.constant 0 : index
    %56 = vector.load %arg7[%c0_24, %c0_25] : memref<32x1xf32, #tpu.memory_space<vmem>>, vector<32x1xf32>
    %57 = vector.broadcast %56 : vector<32x1xf32> to vector<32x128xf32>
    %58 = arith.addf %55, %57 : vector<32x128xf32>
    %cst_26 = arith.constant 0.000000e+00 : f32
    %59 = vector.broadcast %cst_26 : f32 to vector<32x128xf32>
    %60 = arith.maximumf %58, %59 : vector<32x128xf32>
    %c0_27 = arith.constant 0 : index
    %c0_28 = arith.constant 0 : index
    %61 = vector.load %arg8[%c0_27, %c0_28] : memref<32x1xf32, #tpu.memory_space<vmem>>, vector<32x1xf32>
    %62 = vector.broadcast %61 : vector<32x1xf32> to vector<32x128xf32>
    %63 = arith.mulf %60, %62 : vector<32x128xf32>
    %cst_29 = arith.constant dense<0.000000e+00> : vector<128xf32>
    %64 = vector.multi_reduction <add>, %63, %cst_29 [0] : vector<32x128xf32> to vector<128xf32>
    %65 = vector.shape_cast %64 : vector<128xf32> to vector<1x128xf32>
    %c1_30 = arith.constant 1 : index
    %66 = memref.load %arg9[%c1_30] : memref<2xf32, #tpu.memory_space<smem>>
    %67 = vector.broadcast %66 : f32 to vector<1x128xf32>
    %68 = arith.addf %65, %67 : vector<1x128xf32>
    %c0_31 = arith.constant 0 : index
    %c0_32 = arith.constant 0 : index
    %69 = vector.load %arg10[%c0_31, %c0_32] : memref<1x128xf32, #tpu.memory_space<vmem>>, vector<1x128xf32>
    tpu.vector_store %arg10[%c0_31, %c0_32], %68 {strides = array<i32>} : memref<1x128xf32, #tpu.memory_space<vmem>>, vector<1x128xf32>,
    return
  }
  func.func @transform_0(%arg0: i32) -> (i32, i32) {
    %c0_i32 = arith.constant 0 : i32
    %c0_i32_0 = arith.constant 0 : i32
    return %c0_i32, %arg0 : i32, i32
  }
  func.func @transform_1(%arg0: i32) -> (i32, i32) {
    %c0_i32 = arith.constant 0 : i32
    %c0_i32_0 = arith.constant 0 : i32
    return %c0_i32, %arg0 : i32, i32
  }
  func.func @transform_2(%arg0: i32) -> (i32, i32) {
    %c0_i32 = arith.constant 0 : i32
    %c0_i32_0 = arith.constant 0 : i32
    %c0_i32_1 = arith.constant 0 : i32
    return %c0_i32, %c0_i32_0 : i32, i32
  }
  func.func @transform_3(%arg0: i32) -> (i32, i32) {
    %c0_i32 = arith.constant 0 : i32
    %c0_i32_0 = arith.constant 0 : i32
    %c0_i32_1 = arith.constant 0 : i32
    return %c0_i32, %c0_i32_0 : i32, i32
  }
  func.func @transform_4(%arg0: i32) -> (i32, i32) {
    %c0_i32 = arith.constant 0 : i32
    %c0_i32_0 = arith.constant 0 : i32
    %c0_i32_1 = arith.constant 0 : i32
    return %c0_i32, %c0_i32_0 : i32, i32
  }
  func.func @transform_5(%arg0: i32) -> (i32, i32) {
    %c0_i32 = arith.constant 0 : i32
    %c0_i32_0 = arith.constant 0 : i32
    %c0_i32_1 = arith.constant 0 : i32
    return %c0_i32, %c0_i32_0 : i32, i32
  }
  func.func @transform_6(%arg0: i32) -> (i32, i32) {
    %c0_i32 = arith.constant 0 : i32
    %c0_i32_0 = arith.constant 0 : i32
    %c0_i32_1 = arith.constant 0 : i32
    return %c0_i32, %c0_i32_0 : i32, i32
  }
  func.func @transform_7(%arg0: i32) -> (i32, i32) {
    %c0_i32 = arith.constant 0 : i32
    %c0_i32_0 = arith.constant 0 : i32
    %c0_i32_1 = arith.constant 0 : i32
    return %c0_i32, %c0_i32_0 : i32, i32
  }
  func.func @transform_8(%arg0: i32) -> i32 {
    %c0_i32 = arith.constant 0 : i32
    %c0_i32_0 = arith.constant 0 : i32
    return %c0_i32 : i32
  }
  func.func @transform_9(%arg0: i32) -> (i32, i32) {
    %c0_i32 = arith.constant 0 : i32
    %c0_i32_0 = arith.constant 0 : i32
    return %c0_i32, %arg0 : i32, i32
  }
}

</mosaic_0001>

<llo_original>
// kernel: _branch_forward.1
$region0: #{_branch_forward.1}
  #allocation0 [shape = 'u32[]', space=smem, size = 0x4, offset = 0x4, fixed_abs, tag = 'smem constant byte address 0x4 - core index']
  #allocation1 [shape = 'u32[144,128]{1,0:T(1,128)}', space=vmem, size = 0x12000, scoped, tag = 'internal scratch']
  %s0 = inlined_call_operand.vmem [shape: f32[2,128], index: 0, kind: input, shape index: {}]
  %s1 = inlined_call_operand.vmem [shape: f32[2,128], index: 1, kind: input, shape index: {}]
  %s2 = inlined_call_operand.vmem [shape: f32[32,2], index: 2, kind: input, shape index: {}]
  %s3 = inlined_call_operand.vmem [shape: f32[32,1], index: 3, kind: input, shape index: {}]
  %s4 = inlined_call_operand.vmem [shape: f32[32,1], index: 4, kind: input, shape index: {}]
  %s5 = inlined_call_operand.vmem [shape: f32[32,2], index: 5, kind: input, shape index: {}]
  %s6 = inlined_call_operand.vmem [shape: f32[32,1], index: 6, kind: input, shape index: {}]
  %s7 = inlined_call_operand.vmem [shape: f32[32,1], index: 7, kind: input, shape index: {}]
  %s8 = inlined_call_operand.vmem [shape: f32[2], index: 8, kind: input, shape index: {}]
  %s9 = inlined_call_operand.vmem [shape: f32[1,128], index: 9, kind: output, shape index: {}]
  %s10 = sld [smem:[#allocation0]]
  $region50: #{_branch_forward.1} parent=0
    _
  %s12 = ssub.s32 1, %s10
  %s13 = scalar_select 0, %s12, %s10
  $region1: #{_branch_forward.1} parent=0
    #allocation2 [shape = 'u8[512]{0}', space=smem, size = 0x200, scoped, tag = 'input window, operand 8, single buffered']
    #allocation3 [shape = 's32[1]{0}', space=sflag, size = 0x4, scoped, tag = 'scoped memory for _branch_forward.1']
    %14 = vsyncpa [#allocation3], 0
    // Predicated region
    $region2: #{_branch_forward.1} parent=1 // pred_check
      _
    $region3: #{_branch_forward.1} parent=1 // pred_check_branch
      %16 = sbr.rel (0) target = $region5
    $region4: #{_branch_forward.1} parent=1 // pred_region
      _
    $region5: #{_branch_forward.1} parent=1 // pred_fallthru
      _
    // Predicated region
    $region6: #{_branch_forward.1} parent=1 // pred_check
      _
    $region7: #{_branch_forward.1} parent=1 // pred_check_branch
      %18 = sbr.rel (0) target = $region9
    $region8: #{_branch_forward.1} parent=1 // pred_region
      _
    $region9: #{_branch_forward.1} parent=1 // pred_fallthru
      _
    // Predicated region
    $region10: #{_branch_forward.1} parent=1 // pred_check
      _
    $region11: #{_branch_forward.1} parent=1 // pred_check_branch
      %20 = sbr.rel (0) target = $region13
    $region12: #{_branch_forward.1} parent=1 // pred_region
      _
    $region13: #{_branch_forward.1} parent=1 // pred_fallthru
      _
    // Predicated region
    $region14: #{_branch_forward.1} parent=1 // pred_check
      _
    $region15: #{_branch_forward.1} parent=1 // pred_check_branch
      %22 = sbr.rel (0) target = $region17
    $region16: #{_branch_forward.1} parent=1 // pred_region
      _
    $region17: #{_branch_forward.1} parent=1 // pred_fallthru
      _
    // Predicated region
    $region18: #{_branch_forward.1} parent=1 // pred_check
      _
    $region19: #{_branch_forward.1} parent=1 // pred_check_branch
      %24 = sbr.rel (0) target = $region21
    $region20: #{_branch_forward.1} parent=1 // pred_region
      _
    $region21: #{_branch_forward.1} parent=1 // pred_fallthru
      _
    // Predicated region
    $region22: #{_branch_forward.1} parent=1 // pred_check
      _
    $region23: #{_branch_forward.1} parent=1 // pred_check_branch
      %26 = sbr.rel (0) target = $region25
    $region24: #{_branch_forward.1} parent=1 // pred_region
      _
    $region25: #{_branch_forward.1} parent=1 // pred_fallthru
      _
    // Predicated region
    $region26: #{_branch_forward.1} parent=1 // pred_check
      _
    $region27: #{_branch_forward.1} parent=1 // pred_check_branch
      %28 = sbr.rel (0) target = $region29
    $region28: #{_branch_forward.1} parent=1 // pred_region
      _
    $region29: #{_branch_forward.1} parent=1 // pred_fallthru
      _
    // Predicated region
    $region30: #{_branch_forward.1} parent=1 // pred_check
      _
    $region31: #{_branch_forward.1} parent=1 // pred_check_branch
      %30 = sbr.rel (0) target = $region33
    $region32: #{_branch_forward.1} parent=1 // pred_region
      _
    $region33: #{_branch_forward.1} parent=1 // pred_fallthru
      _
    // Predicated region
    $region34: #{_branch_forward.1} parent=1 // pred_check
      _
    $region35: #{_branch_forward.1} parent=1 // pred_check_branch
      %32 = sbr.rel (0) target = $region37
    $region36: #{_branch_forward.1} parent=1 // pred_region
      %s34 = ssub.s32 16, 16
      %35 = vsyncadd [#allocation3], %s34
      %s37 = sshll.u32 %s8, 4
      %s38 = int_to_ptr.vmem [resolvable:$true] %s37
      %40 = dma.vmem_to_smem %s38, 16, [#allocation2], [#allocation3]
    $region37: #{_branch_forward.1} parent=1 // pred_fallthru
      _
    // Predicated region
    $region38: #{_branch_forward.1} parent=1 // pred_check
      _
    $region39: #{_branch_forward.1} parent=1 // pred_check_branch
      %42 = sbr.rel (0) target = $region41
    $region40: #{_branch_forward.1} parent=1 // pred_region
      %43 = dma.done [#allocation3], 16
    $region41: #{_branch_forward.1} parent=1 // pred_fallthru
      _
    %44 = sfence
    %v45 = vld [vmem:[%s0] sm:$0x1]
    %v46 = vld [vmem:[%s0 + $0x1] sm:$0x1]
    %v47 = vld [vmem:[%s1] sm:$0x1]
    %v48 = vld [vmem:[%s1 + $0x1] sm:$0x1]
    %v49 = vld [vmem:[%s2] sm:$0xff]
    %v50 = vld [vmem:[%s2 + $0x8] sm:$0xff]
    %v51 = vld [vmem:[%s2 + $0x10] sm:$0xff]
    %v52 = vld [vmem:[%s2 + $0x18] sm:$0xff]
    %v53 = vld [vmem:[%s3] sm:$0xff]
    %v54 = vld [vmem:[%s3 + $0x8] sm:$0xff]
    %v55 = vld [vmem:[%s3 + $0x10] sm:$0xff]
    %v56 = vld [vmem:[%s3 + $0x18] sm:$0xff]
    %v57 = vld [vmem:[%s4] sm:$0xff]
    %v58 = vld [vmem:[%s4 + $0x8] sm:$0xff]
    %v59 = vld [vmem:[%s4 + $0x10] sm:$0xff]
    %v60 = vld [vmem:[%s4 + $0x18] sm:$0xff]
    %s61 = sld [smem:[#allocation2]]
    %63 = vset.pattern.permute.xlu0 0
    %64 = vperm.xlu0 %63, %v49
    %v65 = vpop.permute.xlu0 %64
    %68 = vset.pattern.permute.xlu0 0
    %69 = vperm.xlu0 %68, %v50
    %v70 = vpop.permute.xlu0 %69
    %73 = vset.pattern.permute.xlu0 0
    %74 = vperm.xlu0 %73, %v51
    %v75 = vpop.permute.xlu0 %74
    %78 = vset.pattern.permute.xlu0 0
    %79 = vperm.xlu0 %78, %v52
    %v80 = vpop.permute.xlu0 %79
    %v82 = vlaneseq
    %v83 = vshrl.u32 %v82, 7
    %v84 = vsub.s32 0, %v83
    %v85 = vrot.slane %v45, %v84
    %v86 = vmul.f32 %v65, %v85
    %v87 = vmul.f32 %v70, %v85
    %v88 = vmul.f32 %v75, %v85
    %v89 = vmul.f32 %v80, %v85
    %90 = vset.pattern.permute.xlu0 1
    %91 = vperm.xlu0 %90, %v49
    %v92 = vpop.permute.xlu0 %91
    %94 = vset.pattern.permute.xlu0 1
    %95 = vperm.xlu0 %94, %v50
    %v96 = vpop.permute.xlu0 %95
    %98 = vset.pattern.permute.xlu0 1
    %99 = vperm.xlu0 %98, %v51
    %v100 = vpop.permute.xlu0 %99
    %102 = vset.pattern.permute.xlu0 1
    %103 = vperm.xlu0 %102, %v52
    %v104 = vpop.permute.xlu0 %103
    %v106 = vlaneseq
    %v107 = vshrl.u32 %v106, 7
    %v108 = vsub.s32 0, %v107
    %v109 = vrot.slane %v47, %v108
    %v110 = vmul.f32 %v92, %v109
    %v111 = vmul.f32 %v96, %v109
    %v112 = vmul.f32 %v100, %v109
    %v113 = vmul.f32 %v104, %v109
    %v114 = vadd.f32 %v86, %v110
    %v115 = vadd.f32 %v87, %v111
    %v116 = vadd.f32 %v88, %v112
    %v117 = vadd.f32 %v89, %v113
    %119 = vset.pattern.permute.xlu0 0
    %120 = vperm.xlu0 %119, %v53
    %v121 = vpop.permute.xlu0 %120
    %124 = vset.pattern.permute.xlu0 0
    %125 = vperm.xlu0 %124, %v54
    %v126 = vpop.permute.xlu0 %125
    %129 = vset.pattern.permute.xlu0 0
    %130 = vperm.xlu0 %129, %v55
    %v131 = vpop.permute.xlu0 %130
    %134 = vset.pattern.permute.xlu0 0
    %135 = vperm.xlu0 %134, %v56
    %v136 = vpop.permute.xlu0 %135
    %v138 = vadd.f32 %v114, %v121
    %v139 = vadd.f32 %v115, %v126
    %v140 = vadd.f32 %v116, %v131
    %v141 = vadd.f32 %v117, %v136
    %v142 = vmax.f32 %v138, 0.0
    %v143 = vmax.f32 %v139, 0.0
    %v144 = vmax.f32 %v140, 0.0
    %v145 = vmax.f32 %v141, 0.0
    %v146 = vlaneseq
    %v147 = vshrl.u32 %v146, 7
    %v148 = vsub.s32 0, %v147
    %v149 = vrot.slane %v46, %v148
    %v150 = vmul.f32 %v65, %v149
    %v151 = vmul.f32 %v70, %v149
    %v152 = vmul.f32 %v75, %v149
    %v153 = vmul.f32 %v80, %v149
    %v154 = vlaneseq
    %v155 = vshrl.u32 %v154, 7
    %v156 = vsub.s32 0, %v155
    %v157 = vrot.slane %v48, %v156
    %v158 = vmul.f32 %v92, %v157
    %v159 = vmul.f32 %v96, %v157
    %v160 = vmul.f32 %v100, %v157
    %v161 = vmul.f32 %v104, %v157
    %v162 = vadd.f32 %v150, %v158
    %v163 = vadd.f32 %v151, %v159
    %v164 = vadd.f32 %v152, %v160
    %v165 = vadd.f32 %v153, %v161
    %v166 = vadd.f32 %v162, %v121
    %v167 = vadd.f32 %v163, %v126
    %v168 = vadd.f32 %v164, %v131
    %v169 = vadd.f32 %v165, %v136
    %v170 = vmax.f32 %v166, 0.0
    %v171 = vmax.f32 %v167, 0.0
    %v172 = vmax.f32 %v168, 0.0
    %v173 = vmax.f32 %v169, 0.0
    %175 = vset.pattern.permute.xlu0 0
    %176 = vperm.xlu0 %175, %v57
    %v177 = vpop.permute.xlu0 %176
    %180 = vset.pattern.permute.xlu0 0
    %181 = vperm.xlu0 %180, %v58
    %v182 = vpop.permute.xlu0 %181
    %185 = vset.pattern.permute.xlu0 0
    %186 = vperm.xlu0 %185, %v59
    %v187 = vpop.permute.xlu0 %186
    %190 = vset.pattern.permute.xlu0 0
    %191 = vperm.xlu0 %190, %v60
    %v192 = vpop.permute.xlu0 %191
    %v194 = vmul.f32 %v142, %v177
    %v195 = vmul.f32 %v143, %v182
    %v196 = vmul.f32 %v144, %v187
    %v197 = vmul.f32 %v145, %v192
    %v198 = vadd.f32 %v194, %v195
    %v199 = vadd.f32 %v198, %v196
    %v200 = vadd.f32 %v199, %v197
    %v201 = vrot.slane %v200, 4
    %v202 = vadd.f32 %v200, %v201
    %v203 = vrot.slane %v202, 2
    %v204 = vadd.f32 %v202, %v203
    %v205 = vrot.slane %v204, 1
    %v206 = vadd.f32 %v204, %v205
    %v207 = vstv %s61
    %v208 = vadd.f32 %v206, %v207
    %v209 = vmax.f32 %v208, 0.0
    %v210 = vmul.f32 %v170, %v177
    %v211 = vmul.f32 %v171, %v182
    %v212 = vmul.f32 %v172, %v187
    %v213 = vmul.f32 %v173, %v192
    %v214 = vadd.f32 %v210, %v211
    %v215 = vadd.f32 %v214, %v212
    %v216 = vadd.f32 %v215, %v213
    %v217 = vrot.slane %v216, 4
    %v218 = vadd.f32 %v216, %v217
    %v219 = vrot.slane %v218, 2
    %v220 = vadd.f32 %v218, %v219
    %v221 = vrot.slane %v220, 1
    %v222 = vadd.f32 %v220, %v221
    %v223 = vadd.f32 %v222, %v207
    %v224 = vmax.f32 %v223, 0.0
    %v225 = vld [vmem:[%s5] sm:$0xff]
    %v226 = vld [vmem:[%s5 + $0x8] sm:$0xff]
    %v227 = vld [vmem:[%s5 + $0x10] sm:$0xff]
    %v228 = vld [vmem:[%s5 + $0x18] sm:$0xff]
    %230 = vset.pattern.permute.xlu0 0
    %231 = vperm.xlu0 %230, %v225
    %v232 = vpop.permute.xlu0 %231
    %235 = vset.pattern.permute.xlu0 0
    %236 = vperm.xlu0 %235, %v226
    %v237 = vpop.permute.xlu0 %236
    %240 = vset.pattern.permute.xlu0 0
    %241 = vperm.xlu0 %240, %v227
    %v242 = vpop.permute.xlu0 %241
    %245 = vset.pattern.permute.xlu0 0
    %246 = vperm.xlu0 %245, %v228
    %v247 = vpop.permute.xlu0 %246
    %v249 = vmul.f32 %v232, %v209
    %v250 = vmul.f32 %v237, %v209
    %v251 = vmul.f32 %v242, %v209
    %v252 = vmul.f32 %v247, %v209
    %253 = vset.pattern.permute.xlu0 1
    %254 = vperm.xlu0 %253, %v225
    %v255 = vpop.permute.xlu0 %254
    %257 = vset.pattern.permute.xlu0 1
    %258 = vperm.xlu0 %257, %v226
    %v259 = vpop.permute.xlu0 %258
    %261 = vset.pattern.permute.xlu0 1
    %262 = vperm.xlu0 %261, %v227
    %v263 = vpop.permute.xlu0 %262
    %265 = vset.pattern.permute.xlu0 1
    %266 = vperm.xlu0 %265, %v228
    %v267 = vpop.permute.xlu0 %266
    %v269 = vmul.f32 %v255, %v224
    %v270 = vmul.f32 %v259, %v224
    %v271 = vmul.f32 %v263, %v224
    %v272 = vmul.f32 %v267, %v224
    %v273 = vadd.f32 %v249, %v269
    %v274 = vadd.f32 %v250, %v270
    %v275 = vadd.f32 %v251, %v271
    %v276 = vadd.f32 %v252, %v272
    %v277 = vld [vmem:[%s6] sm:$0xff]
    %v278 = vld [vmem:[%s6 + $0x8] sm:$0xff]
    %v279 = vld [vmem:[%s6 + $0x10] sm:$0xff]
    %v280 = vld [vmem:[%s6 + $0x18] sm:$0xff]
    %282 = vset.pattern.permute.xlu0 0
    %283 = vperm.xlu0 %282, %v277
    %v284 = vpop.permute.xlu0 %283
    %287 = vset.pattern.permute.xlu0 0
    %288 = vperm.xlu0 %287, %v278
    %v289 = vpop.permute.xlu0 %288
    %292 = vset.pattern.permute.xlu0 0
    %293 = vperm.xlu0 %292, %v279
    %v294 = vpop.permute.xlu0 %293
    %297 = vset.pattern.permute.xlu0 0
    %298 = vperm.xlu0 %297, %v280
    %v299 = vpop.permute.xlu0 %298
    %v301 = vadd.f32 %v273, %v284
    %v302 = vadd.f32 %v274, %v289
    %v303 = vadd.f32 %v275, %v294
    %v304 = vadd.f32 %v276, %v299
    %v305 = vmax.f32 %v301, 0.0
    %v306 = vmax.f32 %v302, 0.0
    %v307 = vmax.f32 %v303, 0.0
    %v308 = vmax.f32 %v304, 0.0
    %v309 = vld [vmem:[%s7] sm:$0xff]
    %v310 = vld [vmem:[%s7 + $0x8] sm:$0xff]
    %v311 = vld [vmem:[%s7 + $0x10] sm:$0xff]
    %v312 = vld [vmem:[%s7 + $0x18] sm:$0xff]
    %314 = vset.pattern.permute.xlu0 0
    %315 = vperm.xlu0 %314, %v309
    %v316 = vpop.permute.xlu0 %315
    %319 = vset.pattern.permute.xlu0 0
    %320 = vperm.xlu0 %319, %v310
    %v321 = vpop.permute.xlu0 %320
    %324 = vset.pattern.permute.xlu0 0
    %325 = vperm.xlu0 %324, %v311
    %v326 = vpop.permute.xlu0 %325
    %329 = vset.pattern.permute.xlu0 0
    %330 = vperm.xlu0 %329, %v312
    %v331 = vpop.permute.xlu0 %330
    %v333 = vmul.f32 %v305, %v316
    %v334 = vmul.f32 %v306, %v321
    %v335 = vmul.f32 %v307, %v326
    %v336 = vmul.f32 %v308, %v331
    %v337 = vadd.f32 %v333, %v334
    %v338 = vadd.f32 %v337, %v335
    %v339 = vadd.f32 %v338, %v336
    %v340 = vrot.slane %v339, 4
    %v341 = vadd.f32 %v339, %v340
    %v342 = vrot.slane %v341, 2
    %v343 = vadd.f32 %v341, %v342
    %v344 = vrot.slane %v343, 1
    %v345 = vadd.f32 %v343, %v344
    %s346 = sld [smem:[#allocation2 + $0x1]]
    %v347 = vstv %s346
    %v348 = vadd.f32 %v345, %v347
    %349 = vst [vmem:[%s9] sm:$0x1] %v348
    // Predicated region
    $region42: #{_branch_forward.1} parent=1 // pred_check
      _
    $region43: #{_branch_forward.1} parent=1 // pred_check_branch
      %351 = sbr.rel (0) target = $region45
    $region44: #{_branch_forward.1} parent=1 // pred_region
      _
    $region45: #{_branch_forward.1} parent=1 // pred_fallthru
      _
    // Predicated region
    $region46: #{_branch_forward.1} parent=1 // pred_check
      _
    $region47: #{_branch_forward.1} parent=1 // pred_check_branch
      %353 = sbr.rel (0) target = $region49
    $region48: #{_branch_forward.1} parent=1 // pred_region
      _
    $region49: #{_branch_forward.1} parent=1 // pred_fallthru
      _
    %354 = vsyncpa [#allocation3], 1

</llo_original>
